<compile_context>
chip_gen: v6e
topology: v6e:2x2x1
jax: 0.10.0
libtpu: 0.0.40
codegen_flags: <defaults>
</compile_context>

<pallas_src>
import numpy as np
import jax
import jax.numpy as jnp
from jax.experimental import pallas as pl
from jax.experimental.pallas import tpu as pltpu


# ---------------------------------------------------------------------------
# Tiling configuration
# ---------------------------------------------------------------------------
LANES = 1024        # lane-dense last dim (multiple of 128)
TILE_ROWS = 256     # rows per grid step: (256, 1024) f32 = 1 MiB per array tile


def _round_up(x, m):
    return ((x + m - 1) // m) * m


# ---------------------------------------------------------------------------
# Kernel: elementwise  out = mu + softplus(rho) * eps   on one (tile_r, LANES)
# block. Purely memory-bound; the two transcendentals ride in free EUP slots.
# ---------------------------------------------------------------------------
def _sample_kernel(mu_ref, rho_ref, eps_ref, out_ref):
    rho = rho_ref[...]
    # Numerically stable softplus: log1p(exp(rho)) without overflow for large rho.
    sigma = jnp.maximum(rho, 0.0) + jnp.log1p(jnp.exp(-jnp.abs(rho)))
    out_ref[...] = mu_ref[...] + sigma * eps_ref[...]


# ---------------------------------------------------------------------------
# Wrapper
# ---------------------------------------------------------------------------
def parameter_layer_forward(weight_mu, weight_rho, eps, frozen=False):
    """ParameterLayer.forward. All parameter arrays are flat (n_param,) f32."""
    if frozen:
        # Trace-time specialization: frozen forward is the identity on weight_mu.
        # Avoids streaming rho/eps from HBM entirely (3x less read traffic).
        return weight_mu

    n = weight_mu.shape[0]
    rows = pl.cdiv(n, LANES)
    # Rows per block: sublane-aligned (multiple of 8), capped at TILE_ROWS.
    tile_r = min(TILE_ROWS, _round_up(rows, 8))
    rows_p = _round_up(rows, tile_r)
    n_pad = rows_p * LANES

    def to2d(v):
        return jnp.pad(v, (0, n_pad - n)).reshape(rows_p, LANES)

    mu2d = to2d(weight_mu.astype(jnp.float32))
    rho2d = to2d(weight_rho.astype(jnp.float32))
    eps2d = to2d(eps.astype(jnp.float32))

    spec = pl.BlockSpec((tile_r, LANES), lambda i: (i, 0))

    out2d = pl.pallas_call(
        _sample_kernel,
        out_shape=jax.ShapeDtypeStruct((rows_p, LANES), jnp.float32),
        grid=(rows_p // tile_r,),
        in_specs=[spec, spec, spec],
        out_specs=spec,
        compiler_params=pltpu.CompilerParams(
            # Row tiles are independent -> shard across v7x's 2 TensorCores.
            dimension_semantics=("parallel",),
        ),
    )(mu2d, rho2d, eps2d)

    return out2d.reshape(-1)[:n]


# ---------------------------------------------------------------------------
# Demo / self-check
# ---------------------------------------------------------------------------
if __name__ == "__main__":
    posterior_rho_init = -3.0
    key = jax.random.PRNGKey(0)

    def ref_forward(mu, rho, eps, frozen):
        if frozen:
            return mu
        sigma = jnp.maximum(rho, 0.0) + jnp.log1p(jnp.exp(-jnp.abs(rho)))
        return mu + sigma * eps

    # Input x is ignored by ParameterLayer.forward; construct it anyway.
    key, kx = jax.random.split(key)
    x = jax.random.normal(kx, (2, 32), dtype=jnp.float32)
    del x  # unused, matching module semantics

    # Two sizes: a tiny full-block case and a ragged multi-tile case that
    # exercises the grid / padding path.
    for n_param in (4096, 600_000):
        key, k_mu, k_eps = jax.random.split(key, 3)

        # reset_parameters(): weight_mu ~ U(-stdv, stdv), stdv = sqrt(6/n_param)
        stdv = float(np.sqrt(6.0 / n_param))
        weight_mu = jax.random.uniform(
            k_mu, (n_param,), dtype=jnp.float32, minval=-stdv, maxval=stdv
        )
        weight_rho = jnp.full((n_param,), posterior_rho_init, dtype=jnp.float32)
        # A few extreme rho values to exercise the stable-softplus path.
        weight_rho = weight_rho.at[:4].set(
            jnp.array([100.0, 50.0, -50.0, 0.0], dtype=jnp.float32)
        )

        # eps ~ N(0, 1)   (randn_like in the PyTorch forward)
        eps = jax.random.normal(k_eps, (n_param,), dtype=jnp.float32)

        # Sampled (un-frozen) path
        weight = parameter_layer_forward(weight_mu, weight_rho, eps, frozen=False)
        weight = jax.block_until_ready(weight)
        np.testing.assert_allclose(
            np.asarray(weight),
            np.asarray(ref_forward(weight_mu, weight_rho, eps, False)),
            rtol=1e-6, atol=1e-6,
        )
        assert np.isfinite(np.asarray(weight)).all()

        # Frozen path returns weight_mu exactly (no kernel launched)
        weight_f = parameter_layer_forward(weight_mu, weight_rho, eps, frozen=True)
        weight_f = jax.block_until_ready(weight_f)
        np.testing.assert_allclose(
            np.asarray(weight_f), np.asarray(weight_mu), rtol=0, atol=0
        )

    print("KERNEL_OK")
</pallas_src>

<mosaic_0001>
module attributes {stable_mosaic.version = 11 : i64} {
  func.func @_sample_kernel(%arg0: i32, %arg1: memref<8x1024xf32, #tpu.memory_space<vmem>>, %arg2: memref<8x1024xf32, #tpu.memory_space<vmem>>, %arg3: memref<8x1024xf32, #tpu.memory_space<vmem>>, %arg4: memref<8x1024xf32, #tpu.memory_space<vmem>>) attributes {dimension_semantics = [#tpu.dimension_semantics<parallel>], iteration_bounds = array<i64: 1>, scalar_prefetch = 0 : i64, scratch_operands = 0 : i64, tpu.core_type = #tpu.core_type<tc>, window_params = [{transform_indices = @transform_0, window_bounds = array<i64: 8, 1024>}, {transform_indices = @transform_1, window_bounds = array<i64: 8, 1024>}, {transform_indices = @transform_2, window_bounds = array<i64: 8, 1024>}, {transform_indices = @transform_3, window_bounds = array<i64: 8, 1024>}]} {
    %c0 = arith.constant 0 : index
    %c0_0 = arith.constant 0 : index
    %0 = vector.load %arg2[%c0, %c0_0] : memref<8x1024xf32, #tpu.memory_space<vmem>>, vector<8x1024xf32>
    %cst = arith.constant 0.000000e+00 : f32
    %1 = vector.broadcast %cst : f32 to vector<8x1024xf32>
    %2 = arith.maximumf %0, %1 : vector<8x1024xf32>
    %3 = math.absf %0 : vector<8x1024xf32>
    %cst_1 = arith.constant 0.000000e+00 : f32
    %4 = vector.broadcast %cst_1 : f32 to vector<8x1024xf32>
    %5 = arith.subf %4, %3 : vector<8x1024xf32>
    %6 = math.exp %5 : vector<8x1024xf32>
    %7 = math.log1p %6 : vector<8x1024xf32>
    %8 = arith.addf %2, %7 : vector<8x1024xf32>
    %c0_2 = arith.constant 0 : index
    %c0_3 = arith.constant 0 : index
    %9 = vector.load %arg1[%c0_2, %c0_3] : memref<8x1024xf32, #tpu.memory_space<vmem>>, vector<8x1024xf32>
    %c0_4 = arith.constant 0 : index
    %c0_5 = arith.constant 0 : index
    %10 = vector.load %arg3[%c0_4, %c0_5] : memref<8x1024xf32, #tpu.memory_space<vmem>>, vector<8x1024xf32>
    %11 = arith.mulf %8, %10 : vector<8x1024xf32>
    %12 = arith.addf %9, %11 : vector<8x1024xf32>
    %c0_6 = arith.constant 0 : index
    %c0_7 = arith.constant 0 : index
    %13 = vector.load %arg4[%c0_6, %c0_7] : memref<8x1024xf32, #tpu.memory_space<vmem>>, vector<8x1024xf32>
    tpu.vector_store %arg4[%c0_6, %c0_7], %12 {strides = array<i32>} : memref<8x1024xf32, #tpu.memory_space<vmem>>, vector<8x1024xf32>,
    return
  }
  func.func @transform_0(%arg0: i32) -> (i32, i32) {
    %c0_i32 = arith.constant 0 : i32
    %c0_i32_0 = arith.constant 0 : i32
    return %arg0, %c0_i32 : i32, i32
  }
  func.func @transform_1(%arg0: i32) -> (i32, i32) {
    %c0_i32 = arith.constant 0 : i32
    %c0_i32_0 = arith.constant 0 : i32
    return %arg0, %c0_i32 : i32, i32
  }
  func.func @transform_2(%arg0: i32) -> (i32, i32) {
    %c0_i32 = arith.constant 0 : i32
    %c0_i32_0 = arith.constant 0 : i32
    return %arg0, %c0_i32 : i32, i32
  }
  func.func @transform_3(%arg0: i32) -> (i32, i32) {
    %c0_i32 = arith.constant 0 : i32
    %c0_i32_0 = arith.constant 0 : i32
    return %arg0, %c0_i32 : i32, i32
  }
}

</mosaic_0001>

<llo_original>
// kernel: tpu_custom_call.1
$region0: #{tpu_custom_call.1}
  #allocation0 [shape = 'u32[]', space=smem, size = 0x4, offset = 0x4, fixed_abs, tag = 'smem constant byte address 0x4 - core index']
  #allocation1 [shape = 'u32[144,128]{1,0:T(1,128)}', space=vmem, size = 0x12000, scoped, tag = 'internal scratch']
  %s0 = inlined_call_operand.hbm [shape: f32[8,1024], index: 0, kind: input, shape index: {}]
  %s1 = inlined_call_operand.hbm [shape: f32[8,1024], index: 1, kind: input, shape index: {}]
  %s2 = inlined_call_operand.hbm [shape: f32[8,1024], index: 2, kind: input, shape index: {}]
  %s3 = inlined_call_operand.hbm [shape: f32[8,1024], index: 3, kind: output, shape index: {}]
  %s4 = sld [smem:[#allocation0]]
  $region34: #{tpu_custom_call.1} parent=0
    _
  %s6 = ssub.s32 1, %s4
  %s7 = scalar_select 0, %s6, %s4
  $region1: #{tpu_custom_call.1} parent=0
    #allocation2 [shape = 'u8[32768]{0}', space=vmem, size = 0x8000, scoped, tag = 'input window, operand 0, single buffered']
    #allocation3 [shape = 's32[1]{0}', space=sflag, size = 0x4, scoped, tag = 'scoped memory for tpu_custom_call.1']
    #allocation4 [shape = 's32[1]{0}', space=sflag, size = 0x4, scoped, tag = 'scoped memory for tpu_custom_call.1']
    #allocation5 [shape = 'u8[32768]{0}', space=vmem, size = 0x8000, scoped, tag = 'input window, operand 1, single buffered']
    #allocation6 [shape = 's32[1]{0}', space=sflag, size = 0x4, scoped, tag = 'scoped memory for tpu_custom_call.1']
    #allocation7 [shape = 'u8[32768]{0}', space=vmem, size = 0x8000, scoped, tag = 'input window, operand 2, single buffered']
    #allocation8 [shape = 'u8[32768]{0}', space=vmem, size = 0x8000, scoped, tag = 'output window, operand 0, single buffered']
    %8 = vsyncpa [#allocation3], 0
    %9 = vsyncpa [#allocation6], 0
    %10 = vsyncpa [#allocation4], 0
    // Predicated region
    $region2: #{tpu_custom_call.1} parent=1 // pred_check
      _
    $region3: #{tpu_custom_call.1} parent=1 // pred_check_branch
      %12 = sbr.rel (0) target = $region5
    $region4: #{tpu_custom_call.1} parent=1 // pred_region
      %s14 = ssub.s32 1024, 1024
      %15 = vsyncadd [#allocation3], %s14
      %s17 = sshll.u32 [#allocation2], 4
      %s18 = int_to_ptr.vmem [resolvable:$true] %s17
      %20 = dma.hbm_to_vmem [thread:$0]  %s0, 1024, %s18, [#allocation3]
    $region5: #{tpu_custom_call.1} parent=1 // pred_fallthru
      _
    // Predicated region
    $region6: #{tpu_custom_call.1} parent=1 // pred_check
      _
    $region7: #{tpu_custom_call.1} parent=1 // pred_check_branch
      %22 = sbr.rel (0) target = $region9
    $region8: #{tpu_custom_call.1} parent=1 // pred_region
      %s24 = ssub.s32 1024, 1024
      %25 = vsyncadd [#allocation6], %s24
      %s27 = sshll.u32 [#allocation5], 4
      %s28 = int_to_ptr.vmem [resolvable:$true] %s27
      %30 = dma.hbm_to_vmem [thread:$0]  %s1, 1024, %s28, [#allocation6]
    $region9: #{tpu_custom_call.1} parent=1 // pred_fallthru
      _
    // Predicated region
    $region10: #{tpu_custom_call.1} parent=1 // pred_check
      _
    $region11: #{tpu_custom_call.1} parent=1 // pred_check_branch
      %32 = sbr.rel (0) target = $region13
    $region12: #{tpu_custom_call.1} parent=1 // pred_region
      %s34 = ssub.s32 1024, 1024
      %35 = vsyncadd [#allocation6], %s34
      %s37 = sshll.u32 [#allocation7], 4
      %s38 = int_to_ptr.vmem [resolvable:$true] %s37
      %40 = dma.hbm_to_vmem [thread:$0]  %s2, 1024, %s38, [#allocation6]
    $region13: #{tpu_custom_call.1} parent=1 // pred_fallthru
      _
    // Predicated region
    $region14: #{tpu_custom_call.1} parent=1 // pred_check
      _
    $region15: #{tpu_custom_call.1} parent=1 // pred_check_branch
      %42 = sbr.rel (0) target = $region17
    $region16: #{tpu_custom_call.1} parent=1 // pred_region
      %43 = dma.done [#allocation3], 1024
    $region17: #{tpu_custom_call.1} parent=1 // pred_fallthru
      _
    // Predicated region
    $region18: #{tpu_custom_call.1} parent=1 // pred_check
      _
    $region19: #{tpu_custom_call.1} parent=1 // pred_check_branch
      %45 = sbr.rel (0) target = $region21
    $region20: #{tpu_custom_call.1} parent=1 // pred_region
      %46 = dma.done [#allocation6], 1024
    $region21: #{tpu_custom_call.1} parent=1 // pred_fallthru
      _
    // Predicated region
    $region22: #{tpu_custom_call.1} parent=1 // pred_check
      _
    $region23: #{tpu_custom_call.1} parent=1 // pred_check_branch
      %48 = sbr.rel (0) target = $region25
    $region24: #{tpu_custom_call.1} parent=1 // pred_region
      %49 = dma.done [#allocation6], 1024
    $region25: #{tpu_custom_call.1} parent=1 // pred_fallthru
      _
    %v50 = vld [vmem:[#allocation5] sm:$0xff]
    %v51 = vld [vmem:[#allocation5 + $0x8] sm:$0xff]
    %v52 = vld [vmem:[#allocation5 + $0x10] sm:$0xff]
    %v53 = vld [vmem:[#allocation5 + $0x18] sm:$0xff]
    %v54 = vld [vmem:[#allocation5 + $0x20] sm:$0xff]
    %v55 = vld [vmem:[#allocation5 + $0x28] sm:$0xff]
    %v56 = vld [vmem:[#allocation5 + $0x30] sm:$0xff]
    %v57 = vld [vmem:[#allocation5 + $0x38] sm:$0xff]
    %v58 = vmax.f32 %v50, 0.0
    %v59 = vmax.f32 %v51, 0.0
    %v60 = vmax.f32 %v52, 0.0
    %v61 = vmax.f32 %v53, 0.0
    %v62 = vmax.f32 %v54, 0.0
    %v63 = vmax.f32 %v55, 0.0
    %v64 = vmax.f32 %v56, 0.0
    %v65 = vmax.f32 %v57, 0.0
    %v66 = vand.u32 2147483647, %v50
    %v67 = vand.u32 2147483647, %v51
    %v68 = vand.u32 2147483647, %v52
    %v69 = vand.u32 2147483647, %v53
    %v70 = vand.u32 2147483647, %v54
    %v71 = vand.u32 2147483647, %v55
    %v72 = vand.u32 2147483647, %v56
    %v73 = vand.u32 2147483647, %v57
    %v74 = vsub.f32 0.0, %v66
    %v75 = vsub.f32 0.0, %v67
    %v76 = vsub.f32 0.0, %v68
    %v77 = vsub.f32 0.0, %v69
    %v78 = vsub.f32 0.0, %v70
    %v79 = vsub.f32 0.0, %v71
    %v80 = vsub.f32 0.0, %v72
    %v81 = vsub.f32 0.0, %v73
    %v82 = vmul.f32 %v74, 1.442695
    %v83 = vpow.pop %v82
    %v84 = vmul.f32 %v75, 1.442695
    %v85 = vpow.pop %v84
    %v86 = vmul.f32 %v76, 1.442695
    %v87 = vpow.pop %v86
    %v88 = vmul.f32 %v77, 1.442695
    %v89 = vpow.pop %v88
    %v90 = vmul.f32 %v78, 1.442695
    %v91 = vpow.pop %v90
    %v92 = vmul.f32 %v79, 1.442695
    %v93 = vpow.pop %v92
    %v94 = vmul.f32 %v80, 1.442695
    %v95 = vpow.pop %v94
    %v96 = vmul.f32 %v81, 1.442695
    %v97 = vpow.pop %v96
    %v98 = vadd.f32 %v83, 1.0
    %v99 = vlog2.pop %v98
    %v100 = vmul.f32 %v99, 0.6931472
    %v101 = vmul.f32 -0.5, %v83
    %v102 = vadd.f32 %v101, 1.0
    %v103 = vmul.f32 %v102, %v83
    %v104 = vand.u32 2147483647, %v83
    %vm105 = vcmp.lt.f32.partialorder %v104, 0.0004427343
    %v106 = vsel %vm105, %v103, %v100
    %v107 = vadd.f32 %v85, 1.0
    %v108 = vlog2.pop %v107
    %v109 = vmul.f32 %v108, 0.6931472
    %v110 = vmul.f32 -0.5, %v85
    %v111 = vadd.f32 %v110, 1.0
    %v112 = vmul.f32 %v111, %v85
    %v113 = vand.u32 2147483647, %v85
    %vm114 = vcmp.lt.f32.partialorder %v113, 0.0004427343
    %v115 = vsel %vm114, %v112, %v109
    %v116 = vadd.f32 %v87, 1.0
    %v117 = vlog2.pop %v116
    %v118 = vmul.f32 %v117, 0.6931472
    %v119 = vmul.f32 -0.5, %v87
    %v120 = vadd.f32 %v119, 1.0
    %v121 = vmul.f32 %v120, %v87
    %v122 = vand.u32 2147483647, %v87
    %vm123 = vcmp.lt.f32.partialorder %v122, 0.0004427343
    %v124 = vsel %vm123, %v121, %v118
    %v125 = vadd.f32 %v89, 1.0
    %v126 = vlog2.pop %v125
    %v127 = vmul.f32 %v126, 0.6931472
    %v128 = vmul.f32 -0.5, %v89
    %v129 = vadd.f32 %v128, 1.0
    %v130 = vmul.f32 %v129, %v89
    %v131 = vand.u32 2147483647, %v89
    %vm132 = vcmp.lt.f32.partialorder %v131, 0.0004427343
    %v133 = vsel %vm132, %v130, %v127
    %v134 = vadd.f32 %v91, 1.0
    %v135 = vlog2.pop %v134
    %v136 = vmul.f32 %v135, 0.6931472
    %v137 = vmul.f32 -0.5, %v91
    %v138 = vadd.f32 %v137, 1.0
    %v139 = vmul.f32 %v138, %v91
    %v140 = vand.u32 2147483647, %v91
    %vm141 = vcmp.lt.f32.partialorder %v140, 0.0004427343
    %v142 = vsel %vm141, %v139, %v136
    %v143 = vadd.f32 %v93, 1.0
    %v144 = vlog2.pop %v143
    %v145 = vmul.f32 %v144, 0.6931472
    %v146 = vmul.f32 -0.5, %v93
    %v147 = vadd.f32 %v146, 1.0
    %v148 = vmul.f32 %v147, %v93
    %v149 = vand.u32 2147483647, %v93
    %vm150 = vcmp.lt.f32.partialorder %v149, 0.0004427343
    %v151 = vsel %vm150, %v148, %v145
    %v152 = vadd.f32 %v95, 1.0
    %v153 = vlog2.pop %v152
    %v154 = vmul.f32 %v153, 0.6931472
    %v155 = vmul.f32 -0.5, %v95
    %v156 = vadd.f32 %v155, 1.0
    %v157 = vmul.f32 %v156, %v95
    %v158 = vand.u32 2147483647, %v95
    %vm159 = vcmp.lt.f32.partialorder %v158, 0.0004427343
    %v160 = vsel %vm159, %v157, %v154
    %v161 = vadd.f32 %v97, 1.0
    %v162 = vlog2.pop %v161
    %v163 = vmul.f32 %v162, 0.6931472
    %v164 = vmul.f32 -0.5, %v97
    %v165 = vadd.f32 %v164, 1.0
    %v166 = vmul.f32 %v165, %v97
    %v167 = vand.u32 2147483647, %v97
    %vm168 = vcmp.lt.f32.partialorder %v167, 0.0004427343
    %v169 = vsel %vm168, %v166, %v163
    %v170 = vadd.f32 %v58, %v106
    %v171 = vadd.f32 %v59, %v115
    %v172 = vadd.f32 %v60, %v124
    %v173 = vadd.f32 %v61, %v133
    %v174 = vadd.f32 %v62, %v142
    %v175 = vadd.f32 %v63, %v151
    %v176 = vadd.f32 %v64, %v160
    %v177 = vadd.f32 %v65, %v169
    %v178 = vld [vmem:[#allocation2] sm:$0xff]
    %v179 = vld [vmem:[#allocation2 + $0x8] sm:$0xff]
    %v180 = vld [vmem:[#allocation2 + $0x10] sm:$0xff]
    %v181 = vld [vmem:[#allocation2 + $0x18] sm:$0xff]
    %v182 = vld [vmem:[#allocation2 + $0x20] sm:$0xff]
    %v183 = vld [vmem:[#allocation2 + $0x28] sm:$0xff]
    %v184 = vld [vmem:[#allocation2 + $0x30] sm:$0xff]
    %v185 = vld [vmem:[#allocation2 + $0x38] sm:$0xff]
    %v186 = vld [vmem:[#allocation7] sm:$0xff]
    %v187 = vld [vmem:[#allocation7 + $0x8] sm:$0xff]
    %v188 = vld [vmem:[#allocation7 + $0x10] sm:$0xff]
    %v189 = vld [vmem:[#allocation7 + $0x18] sm:$0xff]
    %v190 = vld [vmem:[#allocation7 + $0x20] sm:$0xff]
    %v191 = vld [vmem:[#allocation7 + $0x28] sm:$0xff]
    %v192 = vld [vmem:[#allocation7 + $0x30] sm:$0xff]
    %v193 = vld [vmem:[#allocation7 + $0x38] sm:$0xff]
    %v194 = vmul.f32 %v170, %v186
    %v195 = vmul.f32 %v171, %v187
    %v196 = vmul.f32 %v172, %v188
    %v197 = vmul.f32 %v173, %v189
    %v198 = vmul.f32 %v174, %v190
    %v199 = vmul.f32 %v175, %v191
    %v200 = vmul.f32 %v176, %v192
    %v201 = vmul.f32 %v177, %v193
    %v202 = vadd.f32 %v178, %v194
    %v203 = vadd.f32 %v179, %v195
    %v204 = vadd.f32 %v180, %v196
    %v205 = vadd.f32 %v181, %v197
    %v206 = vadd.f32 %v182, %v198
    %v207 = vadd.f32 %v183, %v199
    %v208 = vadd.f32 %v184, %v200
    %v209 = vadd.f32 %v185, %v201
    %210 = vst [vmem:[#allocation8] sm:$0xff] %v202
    %211 = vst [vmem:[#allocation8 + $0x8] sm:$0xff] %v203
    %212 = vst [vmem:[#allocation8 + $0x10] sm:$0xff] %v204
    %213 = vst [vmem:[#allocation8 + $0x18] sm:$0xff] %v205
    %214 = vst [vmem:[#allocation8 + $0x20] sm:$0xff] %v206
    %215 = vst [vmem:[#allocation8 + $0x28] sm:$0xff] %v207
    %216 = vst [vmem:[#allocation8 + $0x30] sm:$0xff] %v208
    %217 = vst [vmem:[#allocation8 + $0x38] sm:$0xff] %v209
    // Predicated region
    $region26: #{tpu_custom_call.1} parent=1 // pred_check
      _
    $region27: #{tpu_custom_call.1} parent=1 // pred_check_branch
      %219 = sbr.rel (0) target = $region29
    $region28: #{tpu_custom_call.1} parent=1 // pred_region
      %s221 = ssub.s32 1024, 1024
      %222 = vsyncadd [#allocation4], %s221
      %s224 = sshll.u32 [#allocation8], 4
      %s225 = int_to_ptr.vmem [resolvable:$true] %s224
      %227 = dma.vmem_to_hbm [thread:$0]  %s225, 1024, %s3, [#allocation4]
    $region29: #{tpu_custom_call.1} parent=1 // pred_fallthru
      _
    // Predicated region
    $region30: #{tpu_custom_call.1} parent=1 // pred_check
      _
    $region31: #{tpu_custom_call.1} parent=1 // pred_check_branch
      %229 = sbr.rel (0) target = $region33
    $region32: #{tpu_custom_call.1} parent=1 // pred_region
      %230 = dma.done [#allocation4], 1024
    $region33: #{tpu_custom_call.1} parent=1 // pred_fallthru
      _
    %231 = vsyncpa [#allocation3], 1
    %232 = vsyncpa [#allocation6], 1
    %233 = vsyncpa [#allocation4], 1

</llo_original>
